<compile_context>
chip_gen: v5e
topology: v5e:2x2
jax: 0.10.0
libtpu: 0.0.40
codegen_flags: <defaults>
</compile_context>

<pallas_src>
import jax
import jax.numpy as jnp
from jax.experimental import pallas as pl
from jax.experimental.pallas import tpu as pltpu

_TARGET_BLOCK_BYTES = 4 << 20     # ~4 MiB per block (per-step overhead ~10%).
_VMEM_LIMIT_BYTES = 32 << 20      # 6 double-buffered 4 MiB blocks = 24 MiB + headroom;
                                  # fits v5e (128 MiB), v6e (128 MiB), v7x (64 MiB) physical VMEM.
_MIN_PALLAS_BYTES = 4 << 20       # below ~4 MiB, XLA's fused add beats kernel launch cost.


def _pos_enc_kernel(x_ref, emb_ref, o_ref):
    # x_ref/o_ref: (bb, tS, D); emb_ref: (tS, D).  Broadcast add over the
    # (possibly size-1) batch-block dim; VPU cost is invisible at HBM roofline.
    o_ref[...] = x_ref[...] + emb_ref[...]


def _pos_enc_pallas(x3, emb2):
    """x3: [B, S, D]; emb2: [S, D], same dtype as x3. Returns [B, S, D]."""
    B, S, D = x3.shape
    itemsize = jnp.dtype(x3.dtype).itemsize
    row_bytes = D * itemsize

    if row_bytes * S <= _TARGET_BLOCK_BYTES:
        # Small per-batch slab: take the full (S, D) per block and fold several
        # batch elements into one block so each step still moves ~4 MiB.
        tS = S
        bb = int(min(B, max(1, _TARGET_BLOCK_BYTES // max(1, row_bytes * S))))
    else:
        # Large per-batch slab: one batch element per block, tile the seq axis.
        bb = 1
        tS = int(min(S, max(8, (_TARGET_BLOCK_BYTES // row_bytes) // 8 * 8)))
        # tS is either == S (full dim, always legal) or a multiple of 8.

    grid_s = pl.cdiv(S, tS)
    grid_b = pl.cdiv(B, bb)

    cost = pl.CostEstimate(
        flops=B * S * D,
        transcendentals=0,
        bytes_accessed=(2 * B * S * D + S * D) * itemsize,
    )

    return pl.pallas_call(
        _pos_enc_kernel,
        out_shape=jax.ShapeDtypeStruct((B, S, D), x3.dtype),
        grid_spec=pltpu.PrefetchScalarGridSpec(
            num_scalar_prefetch=0,
            # Batch is the innermost (fastest-varying) grid axis: the emb block
            # index (s, 0) is constant across it, so each emb tile is fetched
            # once per seq tile rather than once per (b, tile).
            grid=(grid_s, grid_b),
            in_specs=[
                pl.BlockSpec((bb, tS, D), lambda s, b: (b, s, 0)),
                pl.BlockSpec((tS, D), lambda s, b: (s, 0)),
            ],
            out_specs=pl.BlockSpec((bb, tS, D), lambda s, b: (b, s, 0)),
        ),
        compiler_params=pltpu.CompilerParams(
            # Seq axis parallel -> v7x 2-TC split lands on rows (keeps emb
            # reuse and contiguous HBM streams per core); no accumulation, so
            # this is purely a scheduling choice.
            dimension_semantics=("parallel", "arbitrary"),
            vmem_limit_bytes=_VMEM_LIMIT_BYTES,
        ),
        cost_estimate=cost,
    )(x3, emb2)


def positional_encoding(x, emb_table, batched=False, force_pallas=False):
    """Adds positional embeddings emb_table[0:seq_len] to x.

    x: [B, S, D] if batched else [S, D]; emb_table: [num_positions, D].
    Returns an array with the same shape and dtype as x.
    """
    orig_shape = x.shape
    x3 = x if batched else x[None, ...]
    B, S, D = x3.shape
    assert S <= emb_table.shape[0], "seq len exceeds num_positions"
    assert D == emb_table.shape[1]

    # NOTE: if x is lower precision than the table (e.g. bf16 activations with
    # an f32 table), the add happens at x's precision.  Matches the usual
    # mixed-precision behaviour; adjust here if f32-parity add is required.
    emb2 = emb_table[:S].astype(x3.dtype)

    nbytes = x3.size * jnp.dtype(x3.dtype).itemsize
    if nbytes < _MIN_PALLAS_BYTES and not force_pallas:
        # Tiny input: plain XLA fused add is strictly faster than kernel launch.
        out = x3 + emb2[None, :, :]
    else:
        out = _pos_enc_pallas(x3, emb2)

    return out if batched else out.reshape(orig_shape)


if __name__ == "__main__":
    d_model = 32
    num_positions = 20
    batch = 2
    seq = 8

    key = jax.random.PRNGKey(0)
    k_emb, k_x, k_x2, k_emb2, k_x3, k_emb3, k_x4, k_x5 = jax.random.split(key, 8)

    # Deterministic "nn.Embedding(num_positions, d_model)" weight
    emb_table = jax.random.normal(k_emb, (num_positions, d_model), dtype=jnp.float32)

    # --- Batched path: x is [batch, seq, d_model] (Pallas path forced) ---
    x_batched = jax.random.normal(k_x, (batch, seq, d_model), dtype=jnp.float32)
    out_b = positional_encoding(x_batched, emb_table, batched=True, force_pallas=True)
    out_b = jax.block_until_ready(out_b)

    # --- Unbatched path: x is [seq, d_model] (Pallas path forced) ---
    x_unbatched = jax.random.normal(k_x2, (seq, d_model), dtype=jnp.float32)
    out_u = positional_encoding(x_unbatched, emb_table, batched=False, force_pallas=True)
    out_u = jax.block_until_ready(out_u)

    # --- Odd shapes: S=9, D=100 (D not a multiple of 128, S not of 8) ---
    emb_odd = jax.random.normal(k_emb2, (num_positions, 100), dtype=jnp.float32)
    x_odd = jax.random.normal(k_x3, (batch, 9, 100), dtype=jnp.float32)
    out_o = jax.block_until_ready(
        positional_encoding(x_odd, emb_odd, batched=True, force_pallas=True))

    # --- Larger shape exercising the multi-tile seq grid + automatic path ---
    emb_big = jax.random.normal(k_emb3, (512, 1024), dtype=jnp.float32)
    x_big = jax.random.normal(k_x4, (4, 512, 1024), dtype=jnp.float32)
    out_big = jax.block_until_ready(
        positional_encoding(x_big, emb_big, batched=True))

    # --- Large-B / small-S*D regime exercising batch-blocked tiles ---
    x_manyb = jax.random.normal(k_x5, (64, seq, d_model), dtype=jnp.float32)
    out_mb = jax.block_until_ready(
        positional_encoding(x_manyb, emb_table, batched=True, force_pallas=True))

    # --- Tiny-input XLA fallback path ---
    out_fb = jax.block_until_ready(
        positional_encoding(x_batched, emb_table, batched=True))

    # Reference checks (pure JAX)
    ref_b = x_batched + emb_table[:seq][None, :, :]
    ref_u = x_unbatched + emb_table[:seq]
    ref_o = x_odd + emb_odd[:9][None, :, :]
    ref_big = x_big + emb_big[:512][None, :, :]
    ref_mb = x_manyb + emb_table[:seq][None, :, :]

    assert out_b.shape == x_batched.shape and out_b.dtype == x_batched.dtype
    assert out_u.shape == x_unbatched.shape and out_u.dtype == x_unbatched.dtype
    assert jnp.allclose(out_b, ref_b, atol=1e-6)
    assert jnp.allclose(out_u, ref_u, atol=1e-6)
    assert jnp.allclose(out_o, ref_o, atol=1e-6)
    assert jnp.allclose(out_big, ref_big, atol=1e-6)
    assert jnp.allclose(out_mb, ref_mb, atol=1e-6)
    assert jnp.allclose(out_fb, ref_b, atol=1e-6)

    print("KERNEL_OK")
</pallas_src>

<mosaic_0001>
module attributes {stable_mosaic.version = 11 : i64} {
  func.func @_pos_enc_kernel(%arg0: i32, %arg1: i32, %arg2: memref<2x8x32xf32, #tpu.memory_space<vmem>>, %arg3: memref<8x32xf32, #tpu.memory_space<vmem>>, %arg4: memref<2x8x32xf32, #tpu.memory_space<vmem>>) attributes {dimension_semantics = [#tpu.dimension_semantics<parallel>, #tpu.dimension_semantics<arbitrary>], iteration_bounds = array<i64: 1, 1>, scalar_prefetch = 0 : i64, scratch_operands = 0 : i64, tpu.core_type = #tpu.core_type<tc>, window_params = [{transform_indices = @transform_0, window_bounds = array<i64: 2, 8, 32>}, {transform_indices = @transform_1, window_bounds = array<i64: 8, 32>}, {transform_indices = @transform_2, window_bounds = array<i64: 2, 8, 32>}]} {
    %c0 = arith.constant 0 : index
    %c0_0 = arith.constant 0 : index
    %c0_1 = arith.constant 0 : index
    %0 = vector.load %arg2[%c0, %c0_0, %c0_1] : memref<2x8x32xf32, #tpu.memory_space<vmem>>, vector<2x8x32xf32>
    %c0_2 = arith.constant 0 : index
    %c0_3 = arith.constant 0 : index
    %1 = vector.load %arg3[%c0_2, %c0_3] : memref<8x32xf32, #tpu.memory_space<vmem>>, vector<8x32xf32>
    %2 = vector.shape_cast %1 : vector<8x32xf32> to vector<1x8x32xf32>
    %3 = vector.broadcast %2 : vector<1x8x32xf32> to vector<2x8x32xf32>
    %4 = arith.addf %0, %3 : vector<2x8x32xf32>
    %c0_4 = arith.constant 0 : index
    %c0_5 = arith.constant 0 : index
    %c0_6 = arith.constant 0 : index
    %5 = vector.load %arg4[%c0_4, %c0_5, %c0_6] : memref<2x8x32xf32, #tpu.memory_space<vmem>>, vector<2x8x32xf32>
    tpu.vector_store %arg4[%c0_4, %c0_5, %c0_6], %4 {strides = array<i32>} : memref<2x8x32xf32, #tpu.memory_space<vmem>>, vector<2x8x32xf32>,
    return
  }
  func.func @transform_0(%arg0: i32, %arg1: i32) -> (i32, i32, i32) {
    %c0_i32 = arith.constant 0 : i32
    %c0_i32_0 = arith.constant 0 : i32
    return %arg1, %arg0, %c0_i32 : i32, i32, i32
  }
  func.func @transform_1(%arg0: i32, %arg1: i32) -> (i32, i32) {
    %c0_i32 = arith.constant 0 : i32
    %c0_i32_0 = arith.constant 0 : i32
    return %arg0, %c0_i32 : i32, i32
  }
  func.func @transform_2(%arg0: i32, %arg1: i32) -> (i32, i32, i32) {
    %c0_i32 = arith.constant 0 : i32
    %c0_i32_0 = arith.constant 0 : i32
    return %arg1, %arg0, %c0_i32 : i32, i32, i32
  }
}

</mosaic_0001>

<llo_original>
// kernel: tpu_custom_call.1
$region0: #{tpu_custom_call.1}
  #allocation0 [shape = 'u32[]', space=smem, size = 0x4, offset = 0x4, fixed_abs, tag = 'smem constant byte address 0x4 - core index']
  #allocation1 [shape = 'u32[72,128]{1,0:T(1,128)}', space=vmem, size = 0x9000, scoped, tag = 'internal scratch']
  %s0 = inlined_call_operand.hbm [shape: f32[2,8,32], index: 0, kind: input, shape index: {}]
  %s1 = inlined_call_operand.hbm [shape: f32[8,32], index: 1, kind: input, shape index: {}]
  %s2 = inlined_call_operand.hbm [shape: f32[2,8,32], index: 2, kind: output, shape index: {}]
  %s3 = sld [smem:[#allocation0]]
  $region26: #{tpu_custom_call.1} parent=0
    _
  %s5 = ssub.s32 1, %s3
  %s6 = scalar_select 0, %s5, %s3
  $region1: #{tpu_custom_call.1} parent=0
    #allocation2 [shape = 'u8[8192]{0}', space=vmem, size = 0x2000, scoped, tag = 'input window, operand 0, single buffered']
    #allocation3 [shape = 's32[1]{0}', space=sflag, size = 0x4, scoped, tag = 'scoped memory for tpu_custom_call.1']
    #allocation4 [shape = 's32[1]{0}', space=sflag, size = 0x4, scoped, tag = 'scoped memory for tpu_custom_call.1']
    #allocation5 [shape = 'u8[4096]{0}', space=vmem, size = 0x1000, scoped, tag = 'input window, operand 1, single buffered']
    #allocation6 [shape = 's32[1]{0}', space=sflag, size = 0x4, scoped, tag = 'scoped memory for tpu_custom_call.1']
    #allocation7 [shape = 'u8[8192]{0}', space=vmem, size = 0x2000, scoped, tag = 'output window, operand 0, single buffered']
    %7 = vsyncpa [#allocation3], 0
    %8 = vsyncpa [#allocation6], 0
    %9 = vsyncpa [#allocation4], 0
    // Predicated region
    $region2: #{tpu_custom_call.1} parent=1 // pred_check
      _
    $region3: #{tpu_custom_call.1} parent=1 // pred_check_branch
      %11 = sbr.rel (0) target = $region5
    $region4: #{tpu_custom_call.1} parent=1 // pred_region
      %13 = vsyncadd [#allocation3], 0
      %s14 = sshll.u32 %s0, 4
      %s15 = int_to_ptr.hbm [resolvable:$true] %s14
      %s16 = sshll.u32 [#allocation2], 4
      %s17 = int_to_ptr.vmem [resolvable:$true] %s16
      %22 = dma.hbm_to_vmem [thread:$0]  %s15, 256, %s17, [#allocation3], 128, 128, 8
    $region5: #{tpu_custom_call.1} parent=1 // pred_fallthru
      _
    // Predicated region
    $region6: #{tpu_custom_call.1} parent=1 // pred_check
      _
    $region7: #{tpu_custom_call.1} parent=1 // pred_check_branch
      %24 = sbr.rel (0) target = $region9
    $region8: #{tpu_custom_call.1} parent=1 // pred_region
      %26 = vsyncadd [#allocation6], 0
      %s28 = sshll.u32 %s1, 4
      %s29 = int_to_ptr.hbm [resolvable:$true] %s28
      %s30 = sshll.u32 [#allocation5], 4
      %s31 = int_to_ptr.vmem [resolvable:$true] %s30
      %33 = dma.hbm_to_vmem [thread:$0]  %s29, 128, %s31, [#allocation6]
    $region9: #{tpu_custom_call.1} parent=1 // pred_fallthru
      _
    // Predicated region
    $region10: #{tpu_custom_call.1} parent=1 // pred_check
      _
    $region11: #{tpu_custom_call.1} parent=1 // pred_check_branch
      %35 = sbr.rel (0) target = $region13
    $region12: #{tpu_custom_call.1} parent=1 // pred_region
      %37 = dma.done [#allocation3], 256
    $region13: #{tpu_custom_call.1} parent=1 // pred_fallthru
      _
    // Predicated region
    $region14: #{tpu_custom_call.1} parent=1 // pred_check
      _
    $region15: #{tpu_custom_call.1} parent=1 // pred_check_branch
      %39 = sbr.rel (0) target = $region17
    $region16: #{tpu_custom_call.1} parent=1 // pred_region
      %41 = dma.done [#allocation6], 128
    $region17: #{tpu_custom_call.1} parent=1 // pred_fallthru
      _
    %v42 = vld [vmem:[#allocation2] sm:$0xff]
    %v43 = vld [vmem:[#allocation2 + $0x8] sm:$0xff]
    %v44 = vld [vmem:[#allocation5] sm:$0xff]
    %v45 = vadd.f32 %v42, %v44
    %v46 = vadd.f32 %v43, %v44
    %vm47 = vcmask 261120
    %48 = vst.msk [vmem:[#allocation7] sm:$0xff] %vm47, %v45
    %49 = vst.msk [vmem:[#allocation7 + $0x8] sm:$0xff] %vm47, %v46
    // Predicated region
    $region18: #{tpu_custom_call.1} parent=1 // pred_check
      _
    $region19: #{tpu_custom_call.1} parent=1 // pred_check_branch
      %51 = sbr.rel (0) target = $region21
    $region20: #{tpu_custom_call.1} parent=1 // pred_region
      %53 = vsyncadd [#allocation4], 0
      %s54 = sshll.u32 [#allocation7], 4
      %s55 = int_to_ptr.vmem [resolvable:$true] %s54
      %s56 = sshll.u32 %s2, 4
      %s57 = int_to_ptr.hbm [resolvable:$true] %s56
      %62 = dma.vmem_to_hbm [thread:$0]  %s55, 256, %s57, [#allocation4], 128, 128, 8
    $region21: #{tpu_custom_call.1} parent=1 // pred_fallthru
      _
    // Predicated region
    $region22: #{tpu_custom_call.1} parent=1 // pred_check
      _
    $region23: #{tpu_custom_call.1} parent=1 // pred_check_branch
      %64 = sbr.rel (0) target = $region25
    $region24: #{tpu_custom_call.1} parent=1 // pred_region
      %66 = dma.done [#allocation4], 256
    $region25: #{tpu_custom_call.1} parent=1 // pred_fallthru
      _
    %67 = vsyncpa [#allocation3], 1
    %68 = vsyncpa [#allocation6], 1
    %69 = vsyncpa [#allocation4], 1

</llo_original>
